<compile_context>
chip_gen: v7x
topology: tpu7x:2x2x1
jax: 0.10.0
libtpu: 0.0.40
codegen_flags: <defaults>
</compile_context>

<pallas_src>
import jax
import jax.numpy as jnp
from jax.experimental import pallas as pl
from jax.experimental.pallas import tpu as pltpu


def critic_mlp_kernel(obs_ref, act_ref, w1o_ref, w1a_ref, b1_ref,
                      w2_ref, b2_ref, w3_ref, b3_ref, out_ref):
    """Fused Q-critic MLP on one batch tile.

    h1 = relu(obs @ W1_obs + act @ W1_act + b1)   (concat fused into 2 matmuls)
    h2 = relu(h1 @ W2 + b2)
    q  = w3 . h2  computed lane-dense: transpose h2 (XLU) then sublane-reduce,
         so the per-tile result is a single (1, tb) lane-major row.
    """
    h1 = (jnp.dot(obs_ref[...], w1o_ref[...], preferred_element_type=jnp.float32)
          + jnp.dot(act_ref[...], w1a_ref[...], preferred_element_type=jnp.float32)
          + b1_ref[...])
    h1 = jnp.maximum(h1, 0.0)

    h2 = jnp.dot(h1, w2_ref[...], preferred_element_type=jnp.float32) + b2_ref[...]
    h2 = jnp.maximum(h2, 0.0)                                  # (tb, H2)

    # Lane-dense scalar head: (tb, H2) -> (H2, tb) on the XLU (idle slot),
    # multiply by w3 (H2, 1) broadcast over lanes, reduce over sublanes.
    h2t = jnp.transpose(h2)                                    # (H2, tb)
    q = jnp.sum(h2t * w3_ref[...], axis=0, keepdims=True) + b3_ref[...]  # (1, tb)
    out_ref[...] = q.astype(out_ref.dtype)


def critic_forward(obs, act, params, *, tile_batch=4096, core_parallel=False,
                   vmem_limit_bytes=None):
    """Q-critic forward: (obs, act) -> [B, 1] value, batch-tiled Pallas kernel."""
    w1, b1, w2, b2, w3, b3 = params
    batch, obs_dim = obs.shape
    act_dim = act.shape[1]

    # Free host-side parameter re-layout (no HBM activation traffic).
    w1_obs = w1[:obs_dim]            # [obs_dim, H1]
    w1_act = w1[obs_dim:]            # [act_dim, H1]
    # w3 stays [H2, 1]: it broadcasts over lanes against the transposed h2.

    # Batch tile: second-minor block dim must be a multiple of 8 unless it
    # spans the whole batch.
    tb = min(tile_batch, batch)
    if tb < batch and tb % 8 != 0:
        tb = max(8, (tb // 8) * 8)
    num_tiles = pl.cdiv(batch, tb)

    def row_spec(feat):              # streamed activation tiles over batch
        return pl.BlockSpec((tb, feat), lambda i: (i, 0))

    def const_spec(arr):             # weights/biases resident across grid steps
        return pl.BlockSpec(arr.shape, lambda i: (0,) * arr.ndim)

    # On v7x pass core_parallel=True so the batch grid shards across both TCs.
    dim_sem = (pltpu.CORE_PARALLEL,) if core_parallel else ("parallel",)

    # Output: one lane-dense (1, tb) row per grid step; reshaped to (B, 1)
    # in the wrapper (padded rows of a partial last tile are sliced off).
    out_tiles = pl.pallas_call(
        critic_mlp_kernel,
        out_shape=jax.ShapeDtypeStruct((num_tiles, 1, tb), jnp.float32),
        grid=(num_tiles,),
        in_specs=[
            row_spec(obs_dim),
            row_spec(act_dim),
            const_spec(w1_obs),
            const_spec(w1_act),
            const_spec(b1),
            const_spec(w2),
            const_spec(b2),
            const_spec(w3),
            const_spec(b3),
        ],
        out_specs=pl.BlockSpec((None, 1, tb), lambda i: (i, 0, 0)),
        compiler_params=pltpu.CompilerParams(
            dimension_semantics=dim_sem,
            vmem_limit_bytes=vmem_limit_bytes),
    )(obs, act, w1_obs, w1_act, b1, w2, b2, w3, b3)

    return out_tiles.reshape(num_tiles * tb, 1)[:batch]


def xavier_uniform(key, shape):
    fan_in, fan_out = shape
    limit = jnp.sqrt(6.0 / (fan_in + fan_out))
    return jax.random.uniform(key, shape, jnp.float32, -limit, limit)


def init_critic_params(key, obs_dim, act_dim, hidden_sizes):
    """Deterministic xavier_uniform weights / zero biases (as in omnisafe)."""
    dims = [obs_dim + act_dim] + list(hidden_sizes) + [1]
    params = []
    for i in range(len(dims) - 1):
        key, sub = jax.random.split(key)
        w = xavier_uniform(sub, (dims[i], dims[i + 1]))
        b = jnp.zeros((1, dims[i + 1]), jnp.float32)
        params.extend([w, b])
    return tuple(params)


def critic_reference(obs, act, params):
    """Pure-JAX reference for correctness checking."""
    x = jnp.concatenate([obs, act], axis=-1)
    w1, b1, w2, b2, w3, b3 = params
    h1 = jnp.maximum(x @ w1 + b1, 0.0)
    h2 = jnp.maximum(h1 @ w2 + b2, 0.0)
    return h2 @ w3 + b3


if __name__ == "__main__":
    obs_dim, act_dim = 16, 8
    hidden_sizes = [32, 32]

    key = jax.random.PRNGKey(0)
    k_obs, k_act, k_par = jax.random.split(key, 3)
    params = init_critic_params(k_par, obs_dim, act_dim, hidden_sizes)

    # --- small test (grid of 1, whole-batch block) ---
    batch = 2
    obs = jax.random.normal(k_obs, (batch, obs_dim), jnp.float32)
    act = jax.random.normal(k_act, (batch, act_dim), jnp.float32)

    q = jax.block_until_ready(critic_forward(obs, act, params))
    q_ref = critic_reference(obs, act, params)
    assert q.shape == (batch, 1)
    assert jnp.allclose(q, q_ref, atol=1e-5, rtol=1e-5)

    # --- multi-tile test (exercises batch grid, lane-dense stores, and a
    #     partial last tile whose padded rows are sliced off in the wrapper) ---
    batch2 = 20
    obs2 = jax.random.normal(k_obs, (batch2, obs_dim), jnp.float32)
    act2 = jax.random.normal(k_act, (batch2, act_dim), jnp.float32)

    q2 = jax.block_until_ready(critic_forward(obs2, act2, params, tile_batch=8))
    q2_ref = critic_reference(obs2, act2, params)
    assert q2.shape == (batch2, 1)
    assert jnp.allclose(q2, q2_ref, atol=1e-5, rtol=1e-5)

    print("KERNEL_OK")
</pallas_src>

<mosaic_0001>
module attributes {stable_mosaic.version = 11 : i64} {
  func.func @critic_mlp_kernel(%arg0: i32, %arg1: memref<2x16xf32, #tpu.memory_space<vmem>>, %arg2: memref<2x8xf32, #tpu.memory_space<vmem>>, %arg3: memref<16x32xf32, #tpu.memory_space<vmem>>, %arg4: memref<8x32xf32, #tpu.memory_space<vmem>>, %arg5: memref<1x32xf32, #tpu.memory_space<vmem>>, %arg6: memref<32x32xf32, #tpu.memory_space<vmem>>, %arg7: memref<1x32xf32, #tpu.memory_space<vmem>>, %arg8: memref<32x1xf32, #tpu.memory_space<vmem>>, %arg9: memref<1x1xf32, #tpu.memory_space<vmem>>, %arg10: memref<1x1x2xf32, #tpu.memory_space<vmem>>) attributes {dimension_semantics = [#tpu.dimension_semantics<parallel>], iteration_bounds = array<i64: 1>, scalar_prefetch = 0 : i64, scratch_operands = 0 : i64, tpu.core_type = #tpu.core_type<tc>, window_params = [{transform_indices = @transform_0, window_bounds = array<i64: 2, 16>}, {transform_indices = @transform_1, window_bounds = array<i64: 2, 8>}, {pipeline_mode = #tpu.pipeline_mode<synchronous>, transform_indices = @transform_2, window_bounds = array<i64: 16, 32>}, {pipeline_mode = #tpu.pipeline_mode<synchronous>, transform_indices = @transform_3, window_bounds = array<i64: 8, 32>}, {pipeline_mode = #tpu.pipeline_mode<synchronous>, transform_indices = @transform_4, window_bounds = array<i64: 1, 32>}, {pipeline_mode = #tpu.pipeline_mode<synchronous>, transform_indices = @transform_5, window_bounds = array<i64: 32, 32>}, {pipeline_mode = #tpu.pipeline_mode<synchronous>, transform_indices = @transform_6, window_bounds = array<i64: 1, 32>}, {pipeline_mode = #tpu.pipeline_mode<synchronous>, transform_indices = @transform_7, window_bounds = array<i64: 32, 1>}, {pipeline_mode = #tpu.pipeline_mode<synchronous>, transform_indices = @transform_8, window_bounds = array<i64: 1, 1>}, {transform_indices = @transform_9, window_bounds = array<i64: 1, 1, 2>}]} {
    %c0 = arith.constant 0 : index
    %c0_0 = arith.constant 0 : index
    %0 = vector.load %arg1[%c0, %c0_0] : memref<2x16xf32, #tpu.memory_space<vmem>>, vector<2x16xf32>
    %c0_1 = arith.constant 0 : index
    %c0_2 = arith.constant 0 : index
    %1 = vector.load %arg3[%c0_1, %c0_2] : memref<16x32xf32, #tpu.memory_space<vmem>>, vector<16x32xf32>
    %cst = arith.constant dense<0.000000e+00> : vector<2x32xf32>
    %2 = tpu.matmul %0, %1, %cst {dimension_numbers = #tpu.dot_dimension_numbers<[1], [0], [0], [1], [0, 0, 1, 1], [], []>} : vector<2x16xf32>, vector<16x32xf32>, vector<2x32xf32> -> vector<2x32xf32>
    %c0_3 = arith.constant 0 : index
    %c0_4 = arith.constant 0 : index
    %3 = vector.load %arg2[%c0_3, %c0_4] : memref<2x8xf32, #tpu.memory_space<vmem>>, vector<2x8xf32>
    %c0_5 = arith.constant 0 : index
    %c0_6 = arith.constant 0 : index
    %4 = vector.load %arg4[%c0_5, %c0_6] : memref<8x32xf32, #tpu.memory_space<vmem>>, vector<8x32xf32>
    %cst_7 = arith.constant dense<0.000000e+00> : vector<2x32xf32>
    %5 = tpu.matmul %3, %4, %cst_7 {dimension_numbers = #tpu.dot_dimension_numbers<[1], [0], [0], [1], [0, 0, 1, 1], [], []>} : vector<2x8xf32>, vector<8x32xf32>, vector<2x32xf32> -> vector<2x32xf32>
    %6 = arith.addf %2, %5 : vector<2x32xf32>
    %c0_8 = arith.constant 0 : index
    %c0_9 = arith.constant 0 : index
    %7 = vector.load %arg5[%c0_8, %c0_9] : memref<1x32xf32, #tpu.memory_space<vmem>>, vector<1x32xf32>
    %8 = vector.broadcast %7 : vector<1x32xf32> to vector<2x32xf32>
    %9 = arith.addf %6, %8 : vector<2x32xf32>
    %cst_10 = arith.constant 0.000000e+00 : f32
    %10 = vector.broadcast %cst_10 : f32 to vector<2x32xf32>
    %11 = arith.maximumf %9, %10 : vector<2x32xf32>
    %c0_11 = arith.constant 0 : index
    %c0_12 = arith.constant 0 : index
    %12 = vector.load %arg6[%c0_11, %c0_12] : memref<32x32xf32, #tpu.memory_space<vmem>>, vector<32x32xf32>
    %cst_13 = arith.constant dense<0.000000e+00> : vector<2x32xf32>
    %13 = tpu.matmul %11, %12, %cst_13 {dimension_numbers = #tpu.dot_dimension_numbers<[1], [0], [0], [1], [0, 0, 1, 1], [], []>} : vector<2x32xf32>, vector<32x32xf32>, vector<2x32xf32> -> vector<2x32xf32>
    %c0_14 = arith.constant 0 : index
    %c0_15 = arith.constant 0 : index
    %14 = vector.load %arg7[%c0_14, %c0_15] : memref<1x32xf32, #tpu.memory_space<vmem>>, vector<1x32xf32>
    %15 = vector.broadcast %14 : vector<1x32xf32> to vector<2x32xf32>
    %16 = arith.addf %13, %15 : vector<2x32xf32>
    %cst_16 = arith.constant 0.000000e+00 : f32
    %17 = vector.broadcast %cst_16 : f32 to vector<2x32xf32>
    %18 = arith.maximumf %16, %17 : vector<2x32xf32>
    %19 = tpu.transpose %18, [1, 0] : vector<2x32xf32> -> vector<32x2xf32>
    %c0_17 = arith.constant 0 : index
    %c0_18 = arith.constant 0 : index
    %20 = vector.load %arg8[%c0_17, %c0_18] : memref<32x1xf32, #tpu.memory_space<vmem>>, vector<32x1xf32>
    %21 = vector.broadcast %20 : vector<32x1xf32> to vector<32x2xf32>
    %22 = arith.mulf %19, %21 : vector<32x2xf32>
    %cst_19 = arith.constant dense<0.000000e+00> : vector<2xf32>
    %23 = vector.multi_reduction <add>, %22, %cst_19 [0] : vector<32x2xf32> to vector<2xf32>
    %24 = vector.shape_cast %23 : vector<2xf32> to vector<1x2xf32>
    %c0_20 = arith.constant 0 : index
    %c0_21 = arith.constant 0 : index
    %25 = vector.load %arg9[%c0_20, %c0_21] : memref<1x1xf32, #tpu.memory_space<vmem>>, vector<1x1xf32>
    %26 = vector.broadcast %25 : vector<1x1xf32> to vector<1x2xf32>
    %27 = arith.addf %24, %26 : vector<1x2xf32>
    %c0_22 = arith.constant 0 : index
    %c0_23 = arith.constant 0 : index
    %c0_24 = arith.constant 0 : index
    %28 = vector.load %arg10[%c0_22, %c0_23, %c0_24] : memref<1x1x2xf32, #tpu.memory_space<vmem>>, vector<1x1x2xf32>
    %29 = vector.shape_cast %28 : vector<1x1x2xf32> to vector<1x2xf32>
    %30 = vector.shape_cast %27 : vector<1x2xf32> to vector<1x1x2xf32>
    tpu.vector_store %arg10[%c0_22, %c0_23, %c0_24], %30 {strides = array<i32>} : memref<1x1x2xf32, #tpu.memory_space<vmem>>, vector<1x1x2xf32>,
    return
  }
  func.func @transform_0(%arg0: i32) -> (i32, i32) {
    %c0_i32 = arith.constant 0 : i32
    %c0_i32_0 = arith.constant 0 : i32
    return %arg0, %c0_i32 : i32, i32
  }
  func.func @transform_1(%arg0: i32) -> (i32, i32) {
    %c0_i32 = arith.constant 0 : i32
    %c0_i32_0 = arith.constant 0 : i32
    return %arg0, %c0_i32 : i32, i32
  }
  func.func @transform_2(%arg0: i32) -> (i32, i32) {
    %c0_i32 = arith.constant 0 : i32
    %c0_i32_0 = arith.constant 0 : i32
    %c0_i32_1 = arith.constant 0 : i32
    return %c0_i32, %c0_i32_0 : i32, i32
  }
  func.func @transform_3(%arg0: i32) -> (i32, i32) {
    %c0_i32 = arith.constant 0 : i32
    %c0_i32_0 = arith.constant 0 : i32
    %c0_i32_1 = arith.constant 0 : i32
    return %c0_i32, %c0_i32_0 : i32, i32
  }
  func.func @transform_4(%arg0: i32) -> (i32, i32) {
    %c0_i32 = arith.constant 0 : i32
    %c0_i32_0 = arith.constant 0 : i32
    %c0_i32_1 = arith.constant 0 : i32
    return %c0_i32, %c0_i32_0 : i32, i32
  }
  func.func @transform_5(%arg0: i32) -> (i32, i32) {
    %c0_i32 = arith.constant 0 : i32
    %c0_i32_0 = arith.constant 0 : i32
    %c0_i32_1 = arith.constant 0 : i32
    return %c0_i32, %c0_i32_0 : i32, i32
  }
  func.func @transform_6(%arg0: i32) -> (i32, i32) {
    %c0_i32 = arith.constant 0 : i32
    %c0_i32_0 = arith.constant 0 : i32
    %c0_i32_1 = arith.constant 0 : i32
    return %c0_i32, %c0_i32_0 : i32, i32
  }
  func.func @transform_7(%arg0: i32) -> (i32, i32) {
    %c0_i32 = arith.constant 0 : i32
    %c0_i32_0 = arith.constant 0 : i32
    %c0_i32_1 = arith.constant 0 : i32
    return %c0_i32, %c0_i32_0 : i32, i32
  }
  func.func @transform_8(%arg0: i32) -> (i32, i32) {
    %c0_i32 = arith.constant 0 : i32
    %c0_i32_0 = arith.constant 0 : i32
    %c0_i32_1 = arith.constant 0 : i32
    return %c0_i32, %c0_i32_0 : i32, i32
  }
  func.func @transform_9(%arg0: i32) -> (i32, i32, i32) {
    %c0_i32 = arith.constant 0 : i32
    %c0_i32_0 = arith.constant 0 : i32
    %c0_i32_1 = arith.constant 0 : i32
    return %arg0, %c0_i32, %c0_i32_0 : i32, i32, i32
  }
}

</mosaic_0001>

<llo_original>
// kernel: tpu_custom_call.1
$region0: #{tpu_custom_call.1}
  #allocation0 [shape = 'u32[]', space=smem, size = 0x4, offset = 0x4, fixed_abs, tag = 'smem constant byte address 0x4 - core index']
  #allocation1 [shape = 'u32[144,128]{1,0:T(1,128)}', space=vmem, size = 0x12000, scoped, tag = 'internal scratch']
  #allocation2 [shape = 'f32[1,1]{1,0:T(1,128)S(1)}', space=vmem, size = 0x200, scoped, tag = 'scoped memory for tpu_custom_call.1']
  %s0 = inlined_call_operand.vmem [shape: f32[2,16], index: 0, kind: input, shape index: {}]
  %s1 = inlined_call_operand.vmem [shape: f32[2,8], index: 1, kind: input, shape index: {}]
  %s2 = inlined_call_operand.vmem [shape: f32[16,32], index: 2, kind: input, shape index: {}]
  %s3 = inlined_call_operand.hbm [shape: f32[8,32], index: 3, kind: input, shape index: {}]
  %s4 = inlined_call_operand.vmem [shape: f32[1,32], index: 4, kind: input, shape index: {}]
  %s5 = inlined_call_operand.vmem [shape: f32[32,32], index: 5, kind: input, shape index: {}]
  %s6 = inlined_call_operand.vmem [shape: f32[1,32], index: 6, kind: input, shape index: {}]
  %s7 = inlined_call_operand.vmem [shape: f32[32,1], index: 7, kind: input, shape index: {}]
  %s8 = inlined_call_operand.<no memory space> [shape: f32[1,1], index: 8, kind: input, shape index: {}]
  %s9 = inlined_call_operand.hbm [shape: f32[1,1,2], index: 9, kind: output, shape index: {}]
  %s10 = sld [smem:[#allocation0]]
  $region50: #{tpu_custom_call.1} parent=0
    _
  %s12 = ssub.s32 1, %s10
  %s13 = scalar_select 0, %s12, %s10
  %v14 = vstv %s8
  %15 = vst [vmem:[#allocation2] sm:$0x1] %v14
  $region1: #{tpu_custom_call.1} parent=0
    #allocation3 [shape = 'u8[4096]{0}', space=vmem, size = 0x1000, scoped, tag = 'input window, operand 3, single buffered']
    #allocation4 [shape = 's32[1]{0}', space=sflag, size = 0x4, scoped, tag = 'scoped memory for tpu_custom_call.1']
    #allocation5 [shape = 's32[1]{0}', space=sflag, size = 0x4, scoped, tag = 'scoped memory for tpu_custom_call.1']
    #allocation6 [shape = 'u8[512]{0}', space=vmem, size = 0x400, scoped, tag = 'output window, operand 0, single buffered']
    %16 = vsyncpa [#allocation4], 0
    %17 = vsyncpa [#allocation5], 0
    // Predicated region
    $region2: #{tpu_custom_call.1} parent=1 // pred_check
      _
    $region3: #{tpu_custom_call.1} parent=1 // pred_check_branch
      %19 = sbr.rel (0) target = $region5
    $region4: #{tpu_custom_call.1} parent=1 // pred_region
      _
    $region5: #{tpu_custom_call.1} parent=1 // pred_fallthru
      _
    // Predicated region
    $region6: #{tpu_custom_call.1} parent=1 // pred_check
      _
    $region7: #{tpu_custom_call.1} parent=1 // pred_check_branch
      %21 = sbr.rel (0) target = $region9
    $region8: #{tpu_custom_call.1} parent=1 // pred_region
      _
    $region9: #{tpu_custom_call.1} parent=1 // pred_fallthru
      _
    // Predicated region
    $region10: #{tpu_custom_call.1} parent=1 // pred_check
      _
    $region11: #{tpu_custom_call.1} parent=1 // pred_check_branch
      %23 = sbr.rel (0) target = $region13
    $region12: #{tpu_custom_call.1} parent=1 // pred_region
      _
    $region13: #{tpu_custom_call.1} parent=1 // pred_fallthru
      _
    // Predicated region
    $region14: #{tpu_custom_call.1} parent=1 // pred_check
      _
    $region15: #{tpu_custom_call.1} parent=1 // pred_check_branch
      %25 = sbr.rel (0) target = $region17
    $region16: #{tpu_custom_call.1} parent=1 // pred_region
      %s27 = ssub.s32 128, 128
      %28 = vsyncadd [#allocation4], %s27
      %s30 = sshll.u32 [#allocation3], 4
      %s31 = int_to_ptr.vmem [resolvable:$true] %s30
      %33 = dma.hbm_to_vmem [thread:$0]  %s3, 128, %s31, [#allocation4]
    $region17: #{tpu_custom_call.1} parent=1 // pred_fallthru
      _
    // Predicated region
    $region18: #{tpu_custom_call.1} parent=1 // pred_check
      _
    $region19: #{tpu_custom_call.1} parent=1 // pred_check_branch
      %35 = sbr.rel (0) target = $region21
    $region20: #{tpu_custom_call.1} parent=1 // pred_region
      _
    $region21: #{tpu_custom_call.1} parent=1 // pred_fallthru
      _
    // Predicated region
    $region22: #{tpu_custom_call.1} parent=1 // pred_check
      _
    $region23: #{tpu_custom_call.1} parent=1 // pred_check_branch
      %37 = sbr.rel (0) target = $region25
    $region24: #{tpu_custom_call.1} parent=1 // pred_region
      _
    $region25: #{tpu_custom_call.1} parent=1 // pred_fallthru
      _
    // Predicated region
    $region26: #{tpu_custom_call.1} parent=1 // pred_check
      _
    $region27: #{tpu_custom_call.1} parent=1 // pred_check_branch
      %39 = sbr.rel (0) target = $region29
    $region28: #{tpu_custom_call.1} parent=1 // pred_region
      _
    $region29: #{tpu_custom_call.1} parent=1 // pred_fallthru
      _
    // Predicated region
    $region30: #{tpu_custom_call.1} parent=1 // pred_check
      _
    $region31: #{tpu_custom_call.1} parent=1 // pred_check_branch
      %41 = sbr.rel (0) target = $region33
    $region32: #{tpu_custom_call.1} parent=1 // pred_region
      _
    $region33: #{tpu_custom_call.1} parent=1 // pred_fallthru
      _
    // Predicated region
    $region34: #{tpu_custom_call.1} parent=1 // pred_check
      _
    $region35: #{tpu_custom_call.1} parent=1 // pred_check_branch
      %43 = sbr.rel (0) target = $region37
    $region36: #{tpu_custom_call.1} parent=1 // pred_region
      _
    $region37: #{tpu_custom_call.1} parent=1 // pred_fallthru
      _
    // Predicated region
    $region38: #{tpu_custom_call.1} parent=1 // pred_check
      _
    $region39: #{tpu_custom_call.1} parent=1 // pred_check_branch
      %45 = sbr.rel (0) target = $region41
    $region40: #{tpu_custom_call.1} parent=1 // pred_region
      %46 = dma.done [#allocation4], 128
    $region41: #{tpu_custom_call.1} parent=1 // pred_fallthru
      _
    %v47 = vld [vmem:[%s0] sm:$0x3]
    %v48 = vld [vmem:[%s2] sm:$0xff]
    %v49 = vld [vmem:[%s2 + $0x8] sm:$0xff]
    %v50 = vld [vmem:[%s1] sm:$0x3]
    %v51 = vld [vmem:[#allocation3] sm:$0xff]
    %vm52 = vcmask 64512
    %v54 = vsel %vm52, %v50, 0
    %56 = vmatprep.subr.mxu0 0.0
    %57 = vmatpush1.msra.mxu0 %v51
    %58 = vmatprep.subr.mxu0 0.0
    %59 = vmatpush1.msra.mxu0 0.0
    %60 = vmatprep.subr.mxu0 0.0
    %61 = vmatpush1.msra.mxu0 0.0
    %62 = vmatprep.subr.mxu0 0.0
    %63 = vmatpush1.msra.mxu0 0.0
    %64 = vmatprep.subr.mxu0 0.0
    %65 = vmatpush1.msra.mxu0 0.0
    %66 = vmatprep.subr.mxu0 0.0
    %67 = vmatpush1.msra.mxu0 0.0
    %68 = vmatprep.subr.mxu0 0.0
    %69 = vmatpush1.msra.mxu0 0.0
    %70 = vmatprep.subr.mxu0 0.0
    %71 = vmatpush1.msra.mxu0 0.0
    %72 = vmatprep.subr.mxu0 0.0
    %73 = vmatpush1.msra.mxu0 0.0
    %74 = vmatprep.subr.mxu0 0.0
    %75 = vmatpush1.msra.mxu0 0.0
    %76 = vmatprep.subr.mxu0 0.0
    %77 = vmatpush1.msra.mxu0 0.0
    %78 = vmatprep.subr.mxu0 0.0
    %79 = vmatpush1.msra.mxu0 0.0
    %80 = vmatprep.subr.mxu0 0.0
    %81 = vmatpush1.msra.mxu0 0.0
    %82 = vmatprep.subr.mxu0 0.0
    %83 = vmatpush1.msra.mxu0 0.0
    %84 = vmatprep.subr.mxu0 0.0
    %85 = vmatpush1.msra.mxu0 0.0
    %86 = vmatprep.subr.mxu0 0.0
    %87 = vmatpush1.msra.mxu0 0.0
    %88 = vmatprep.subr.mxu0 0.0
    %89 = vmatpush1.msra.mxu0 0.0
    %90 = vmatprep.subr.mxu0 0.0
    %91 = vmatpush1.msra.mxu0 0.0
    %92 = vmatprep.subr.mxu0 0.0
    %93 = vmatpush1.msra.mxu0 0.0
    %94 = vmatprep.subr.mxu0 0.0
    %95 = vmatpush1.msra.mxu0 0.0
    %96 = vmatprep.subr.mxu0 0.0
    %97 = vmatpush1.msra.mxu0 0.0
    %98 = vmatprep.subr.mxu0 0.0
    %99 = vmatpush1.msra.mxu0 0.0
    %100 = vmatprep.subr.mxu0 0.0
    %101 = vmatpush1.msra.mxu0 0.0
    %102 = vmatprep.subr.mxu0 0.0
    %103 = vmatpush1.msra.mxu0 0.0
    %104 = vmatprep.subr.mxu0 0.0
    %105 = vmatpush1.msra.mxu0 0.0
    %106 = vmatprep.subr.mxu0 0.0
    %107 = vmatpush1.msra.mxu0 0.0
    %108 = vmatprep.subr.mxu0 0.0
    %109 = vmatpush1.msra.mxu0 0.0
    %110 = vmatprep.subr.mxu0 0.0
    %111 = vmatpush1.msra.mxu0 0.0
    %112 = vmatprep.subr.mxu0 0.0
    %113 = vmatpush1.msra.mxu0 0.0
    %114 = vmatprep.subr.mxu0 0.0
    %115 = vmatpush1.msra.mxu0 0.0
    %116 = vmatprep.subr.mxu0 0.0
    %117 = vmatpush1.msra.mxu0 0.0
    %118 = vmatprep.subr.mxu0 0.0
    %119 = vmatpush1.msra.mxu0 0.0
    %120 = vmatprep.mubr.f32.mxu0 0.0
    %121 = vmatmul.mubr.f32.gmra.mrb[0].mxu0 %v54
    %v122 = vpop.f32.mrb[0].mxu0
    %v123 = vadd.f32 0.0, %v122
    %v124 = vpop.f32.mrb[0].mxu0
    %125 = vdwg.mxu0
    %vm126 = vcmask 130048
    %v128 = vsel %vm126, %v47, 0
    %130 = vmatprep.subr.mxu0 0.0
    %131 = vmatpush1.msra.mxu0 %v48
    %132 = vmatprep.subr.mxu0 0.0
    %133 = vmatpush1.msra.mxu0 %v49
    %134 = vmatprep.subr.mxu0 0.0
    %135 = vmatpush1.msra.mxu0 0.0
    %136 = vmatprep.subr.mxu0 0.0
    %137 = vmatpush1.msra.mxu0 0.0
    %138 = vmatprep.subr.mxu0 0.0
    %139 = vmatpush1.msra.mxu0 0.0
    %140 = vmatprep.subr.mxu0 0.0
    %141 = vmatpush1.msra.mxu0 0.0
    %142 = vmatprep.subr.mxu0 0.0
    %143 = vmatpush1.msra.mxu0 0.0
    %144 = vmatprep.subr.mxu0 0.0
    %145 = vmatpush1.msra.mxu0 0.0
    %146 = vmatprep.subr.mxu0 0.0
    %147 = vmatpush1.msra.mxu0 0.0
    %148 = vmatprep.subr.mxu0 0.0
    %149 = vmatpush1.msra.mxu0 0.0
    %150 = vmatprep.subr.mxu0 0.0
    %151 = vmatpush1.msra.mxu0 0.0
    %152 = vmatprep.subr.mxu0 0.0
    %153 = vmatpush1.msra.mxu0 0.0
    %154 = vmatprep.subr.mxu0 0.0
    %155 = vmatpush1.msra.mxu0 0.0
    %156 = vmatprep.subr.mxu0 0.0
    %157 = vmatpush1.msra.mxu0 0.0
    %158 = vmatprep.subr.mxu0 0.0
    %159 = vmatpush1.msra.mxu0 0.0
    %160 = vmatprep.subr.mxu0 0.0
    %161 = vmatpush1.msra.mxu0 0.0
    %162 = vmatprep.subr.mxu0 0.0
    %163 = vmatpush1.msra.mxu0 0.0
    %164 = vmatprep.subr.mxu0 0.0
    %165 = vmatpush1.msra.mxu0 0.0
    %166 = vmatprep.subr.mxu0 0.0
    %167 = vmatpush1.msra.mxu0 0.0
    %168 = vmatprep.subr.mxu0 0.0
    %169 = vmatpush1.msra.mxu0 0.0
    %170 = vmatprep.subr.mxu0 0.0
    %171 = vmatpush1.msra.mxu0 0.0
    %172 = vmatprep.subr.mxu0 0.0
    %173 = vmatpush1.msra.mxu0 0.0
    %174 = vmatprep.subr.mxu0 0.0
    %175 = vmatpush1.msra.mxu0 0.0
    %176 = vmatprep.subr.mxu0 0.0
    %177 = vmatpush1.msra.mxu0 0.0
    %178 = vmatprep.subr.mxu0 0.0
    %179 = vmatpush1.msra.mxu0 0.0
    %180 = vmatprep.subr.mxu0 0.0
    %181 = vmatpush1.msra.mxu0 0.0
    %182 = vmatprep.subr.mxu0 0.0
    %183 = vmatpush1.msra.mxu0 0.0
    %184 = vmatprep.subr.mxu0 0.0
    %185 = vmatpush1.msra.mxu0 0.0
    %186 = vmatprep.subr.mxu0 0.0
    %187 = vmatpush1.msra.mxu0 0.0
    %188 = vmatprep.subr.mxu0 0.0
    %189 = vmatpush1.msra.mxu0 0.0
    %190 = vmatprep.subr.mxu0 0.0
    %191 = vmatpush1.msra.mxu0 0.0
    %192 = vmatprep.subr.mxu0 0.0
    %193 = vmatpush1.msra.mxu0 0.0
    %194 = vmatprep.mubr.f32.mxu0 0.0
    %195 = vmatmul.mubr.f32.gmra.mrb[0].mxu0 %v128
    %v196 = vpop.f32.mrb[0].mxu0
    %v197 = vadd.f32 %v123, %v196
    %v198 = vpop.f32.mrb[0].mxu0
    %199 = vdwg.mxu0
    %v200 = vld [vmem:[%s4] sm:$0x1]
    %v202 = vlaneseq
    %v203 = vshrl.u32 %v202, 7
    %v204 = vsub.s32 0, %v203
    %v205 = vrot.slane %v200, %v204
    %v207 = vadd.f32 %v197, %v205
    %v208 = vmax.f32 %v207, 0.0
    %v209 = vld [vmem:[%s5] sm:$0xff]
    %v210 = vld [vmem:[%s5 + $0x8] sm:$0xff]
    %v211 = vld [vmem:[%s5 + $0x10] sm:$0xff]
    %v212 = vld [vmem:[%s5 + $0x18] sm:$0xff]
    %v213 = vld [vmem:[%s6] sm:$0x1]
    %v215 = vlaneseq
    %v216 = vshrl.u32 %v215, 7
    %v217 = vsub.s32 0, %v216
    %v218 = vrot.slane %v213, %v217
    %vm220 = vcmask 261120
    %v222 = vsel %vm220, %v208, 0
    %224 = vmatprep.subr.mxu0 0.0
    %225 = vmatpush1.msra.mxu0 %v209
    %226 = vmatprep.subr.mxu0 0.0
    %227 = vmatpush1.msra.mxu0 %v210
    %228 = vmatprep.subr.mxu0 0.0
    %229 = vmatpush1.msra.mxu0 %v211
    %230 = vmatprep.subr.mxu0 0.0
    %231 = vmatpush1.msra.mxu0 %v212
    %232 = vmatprep.subr.mxu0 0.0
    %233 = vmatpush1.msra.mxu0 0.0
    %234 = vmatprep.subr.mxu0 0.0
    %235 = vmatpush1.msra.mxu0 0.0
    %236 = vmatprep.subr.mxu0 0.0
    %237 = vmatpush1.msra.mxu0 0.0
    %238 = vmatprep.subr.mxu0 0.0
    %239 = vmatpush1.msra.mxu0 0.0
    %240 = vmatprep.subr.mxu0 0.0
    %241 = vmatpush1.msra.mxu0 0.0
    %242 = vmatprep.subr.mxu0 0.0
    %243 = vmatpush1.msra.mxu0 0.0
    %244 = vmatprep.subr.mxu0 0.0
    %245 = vmatpush1.msra.mxu0 0.0
    %246 = vmatprep.subr.mxu0 0.0
    %247 = vmatpush1.msra.mxu0 0.0
    %248 = vmatprep.subr.mxu0 0.0
    %249 = vmatpush1.msra.mxu0 0.0
    %250 = vmatprep.subr.mxu0 0.0
    %251 = vmatpush1.msra.mxu0 0.0
    %252 = vmatprep.subr.mxu0 0.0
    %253 = vmatpush1.msra.mxu0 0.0
    %254 = vmatprep.subr.mxu0 0.0
    %255 = vmatpush1.msra.mxu0 0.0
    %256 = vmatprep.subr.mxu0 0.0
    %257 = vmatpush1.msra.mxu0 0.0
    %258 = vmatprep.subr.mxu0 0.0
    %259 = vmatpush1.msra.mxu0 0.0
    %260 = vmatprep.subr.mxu0 0.0
    %261 = vmatpush1.msra.mxu0 0.0
    %262 = vmatprep.subr.mxu0 0.0
    %263 = vmatpush1.msra.mxu0 0.0
    %264 = vmatprep.subr.mxu0 0.0
    %265 = vmatpush1.msra.mxu0 0.0
    %266 = vmatprep.subr.mxu0 0.0
    %267 = vmatpush1.msra.mxu0 0.0
    %268 = vmatprep.subr.mxu0 0.0
    %269 = vmatpush1.msra.mxu0 0.0
    %270 = vmatprep.subr.mxu0 0.0
    %271 = vmatpush1.msra.mxu0 0.0
    %272 = vmatprep.subr.mxu0 0.0
    %273 = vmatpush1.msra.mxu0 0.0
    %274 = vmatprep.subr.mxu0 0.0
    %275 = vmatpush1.msra.mxu0 0.0
    %276 = vmatprep.subr.mxu0 0.0
    %277 = vmatpush1.msra.mxu0 0.0
    %278 = vmatprep.subr.mxu0 0.0
    %279 = vmatpush1.msra.mxu0 0.0
    %280 = vmatprep.subr.mxu0 0.0
    %281 = vmatpush1.msra.mxu0 0.0
    %282 = vmatprep.subr.mxu0 0.0
    %283 = vmatpush1.msra.mxu0 0.0
    %284 = vmatprep.subr.mxu0 0.0
    %285 = vmatpush1.msra.mxu0 0.0
    %286 = vmatprep.subr.mxu0 0.0
    %287 = vmatpush1.msra.mxu0 0.0
    %288 = vmatprep.mubr.f32.mxu0 0.0
    %289 = vmatmul.mubr.f32.gmra.mrb[0].mxu0 %v222
    %v290 = vpop.f32.mrb[0].mxu0
    %v291 = vadd.f32 %v218, %v290
    %v292 = vpop.f32.mrb[0].mxu0
    %293 = vdwg.mxu0
    %v294 = vmax.f32 %v291, 0.0
    %295 = vxpose.xlu0.b32.start [1/16] %v294, 128
    %296 = vxpose.xlu0.b32.cont [2/16] 0.0, 128
    %297 = vxpose.xlu0.b32.cont [3/16] 0.0, 128
    %298 = vxpose.xlu0.b32.cont [4/16] 0.0, 128
    %299 = vxpose.xlu0.b32.cont [5/16] 0.0, 128
    %300 = vxpose.xlu0.b32.cont [6/16] 0.0, 128
    %301 = vxpose.xlu0.b32.cont [7/16] 0.0, 128
    %302 = vxpose.xlu0.b32.cont [8/16] 0.0, 128
    %303 = vxpose.xlu0.b32.cont [9/16] 0.0, 128
    %304 = vxpose.xlu0.b32.cont [10/16] 0.0, 128
    %305 = vxpose.xlu0.b32.cont [11/16] 0.0, 128
    %306 = vxpose.xlu0.b32.cont [12/16] 0.0, 128
    %307 = vxpose.xlu0.b32.cont [13/16] 0.0, 128
    %308 = vxpose.xlu0.b32.cont [14/16] 0.0, 128
    %309 = vxpose.xlu0.b32.cont [15/16] 0.0, 128
    %310 = vxpose.xlu0.b32.end [16/16] 0.0, 128
    %v311 = vpop.trf.xlu0
    %v312 = vpop.trf.xlu0
    %v313 = vpop.trf.xlu0
    %v314 = vpop.trf.xlu0
    %v315 = vpop.trf.xlu0
    %v316 = vpop.trf.xlu0
    %v317 = vpop.trf.xlu0
    %v318 = vpop.trf.xlu0
    %v319 = vpop.trf.xlu0
    %v320 = vpop.trf.xlu0
    %v321 = vpop.trf.xlu0
    %v322 = vpop.trf.xlu0
    %v323 = vpop.trf.xlu0
    %v324 = vpop.trf.xlu0
    %v325 = vpop.trf.xlu0
    %v326 = vpop.trf.xlu0
    %v327 = vld [vmem:[%s7] sm:$0xff]
    %v328 = vld [vmem:[%s7 + $0x8] sm:$0xff]
    %v329 = vld [vmem:[%s7 + $0x10] sm:$0xff]
    %v330 = vld [vmem:[%s7 + $0x18] sm:$0xff]
    %332 = vset.pattern.permute.xlu0 0
    %333 = vperm.xlu0 %332, %v327
    %v334 = vpop.permute.xlu0 %333
    %337 = vset.pattern.permute.xlu0 0
    %338 = vperm.xlu0 %337, %v328
    %v339 = vpop.permute.xlu0 %338
    %342 = vset.pattern.permute.xlu0 0
    %343 = vperm.xlu0 %342, %v329
    %v344 = vpop.permute.xlu0 %343
    %347 = vset.pattern.permute.xlu0 0
    %348 = vperm.xlu0 %347, %v330
    %v349 = vpop.permute.xlu0 %348
    %v351 = vmul.f32 %v311, %v334
    %v352 = vmul.f32 %v312, %v339
    %v353 = vmul.f32 %v313, %v344
    %v354 = vmul.f32 %v314, %v349
    %vm355 = vcmask 15360
    %v356 = vsel %vm355, %v351, 0.0
    %v357 = vsel %vm355, %v352, 0.0
    %v358 = vadd.f32 %v356, %v357
    %v359 = vsel %vm355, %v353, 0.0
    %v360 = vadd.f32 %v358, %v359
    %v361 = vsel %vm355, %v354, 0.0
    %v362 = vadd.f32 %v360, %v361
    %v363 = vrot.slane %v362, 4
    %v364 = vadd.f32 %v362, %v363
    %v365 = vrot.slane %v364, 2
    %v366 = vadd.f32 %v364, %v365
    %v367 = vrot.slane %v366, 1
    %v368 = vadd.f32 %v366, %v367
    %v369 = vld [vmem:[#allocation2] sm:$0x1]
    %371 = vset.pattern.permute.xlu0 0
    %372 = vperm.xlu0 %371, %v369
    %v373 = vpop.permute.xlu0 %372
    %v375 = vlaneseq
    %v376 = vshrl.u32 %v375, 7
    %v377 = vsub.s32 0, %v376
    %v378 = vrot.slane %v373, %v377
    %v379 = vadd.f32 %v368, %v378
    %vm380 = vcmask 8192
    %381 = vst.msk [vmem:[#allocation6] sm:$0x1] %vm380, %v379
    // Predicated region
    $region42: #{tpu_custom_call.1} parent=1 // pred_check
      _
    $region43: #{tpu_custom_call.1} parent=1 // pred_check_branch
      %383 = sbr.rel (0) target = $region45
    $region44: #{tpu_custom_call.1} parent=1 // pred_region
      %s385 = ssub.s32 16, 16
      %386 = vsyncadd [#allocation5], %s385
      %s388 = sshll.u32 [#allocation6], 4
      %s389 = int_to_ptr.vmem [resolvable:$true] %s388
      %391 = dma.vmem_to_hbm [thread:$0]  %s389, 16, %s9, [#allocation5]
    $region45: #{tpu_custom_call.1} parent=1 // pred_fallthru
      _
    // Predicated region
    $region46: #{tpu_custom_call.1} parent=1 // pred_check
      _
    $region47: #{tpu_custom_call.1} parent=1 // pred_check_branch
      %393 = sbr.rel (0) target = $region49
    $region48: #{tpu_custom_call.1} parent=1 // pred_region
      %394 = dma.done [#allocation5], 16
    $region49: #{tpu_custom_call.1} parent=1 // pred_fallthru
      _
    %395 = vsyncpa [#allocation4], 1
    %396 = vsyncpa [#allocation5], 1

</llo_original>
